<compile_context>
chip_gen: v6e
topology: v6e:2x2x1
jax: 0.10.0
libtpu: 0.0.40
codegen_flags: <defaults>
</compile_context>

<pallas_src>
import math

import jax
import jax.numpy as jnp
from jax.experimental import pallas as pl
from jax.experimental.pallas import tpu as pltpu


def _energies_softmax_store(enc, g, out_ref):
    """energies -> softmax over L -> store, oriented (B, L) for the output.

    enc: (L, B, H) f32 (seq-major, as given), g: (B, H) f32 (already
    W-transformed for 'general'), out_ref: (B, L) output block view.
    """
    # energies[l, b] = g[b] . enc[l, b]; H stays in the lane dim end-to-end
    # (VPU mul + XLU lane-reduce; no MXU batched matvec at these sizes).
    e = jnp.sum(enc * g[None, :, :], axis=-1)            # (L, B)
    e = e.T                                              # (B, L) tiny XLU transpose
    # legacy F.softmax on a 2-D tensor == softmax over the L axis.
    m = jnp.max(e, axis=-1, keepdims=True)               # (B, 1)
    p = jnp.exp(e - m)
    s = jnp.sum(p, axis=-1, keepdims=True)               # (B, 1)
    out_ref[...] = (p * pl.reciprocal(s, approx=False)).astype(out_ref.dtype)


def _attn_kernel_general(enc_ref, hid_ref, wa_ref, out_ref):
    enc = enc_ref[...].astype(jnp.float32)               # (L, B, H) resident in VMEM
    hid = hid_ref[...].astype(jnp.float32)               # (B, H) this timestep
    wa = wa_ref[...].astype(jnp.float32)                 # (H, H)  (out, in)
    # hid . (W y + b) == (hid @ W) . y + const(L)  -> transform hidden only,
    # bias term cancels in the softmax over L and is dropped entirely.
    g = jax.lax.dot_general(hid, wa, (((1,), (0,)), ((), ())),
                            preferred_element_type=jnp.float32)      # (B, H)
    _energies_softmax_store(enc, g, out_ref)


def _attn_kernel_dot(enc_ref, hid_ref, out_ref):
    enc = enc_ref[...].astype(jnp.float32)               # (L, B, H)
    hid = hid_ref[...].astype(jnp.float32)               # (B, H)
    _energies_softmax_store(enc, hid, out_ref)


def attn_forward(hidden, encoder_outputs, params=None, method="general"):
    """Pallas forward of Attn.

    hidden: (B, H)  -> returns (B, 1, L)      (module-compatible single step)
            (T, B, H) -> returns (T, B, 1, L) (batched decoder timesteps; one
                                               pallas_call, enc/W DMA'd once)
    """
    L, B, H = encoder_outputs.shape
    single_step = hidden.ndim == 2
    hid = hidden[None] if single_step else hidden
    T = hid.shape[0]
    assert hid.shape == (T, B, H)

    # encoder_outputs / attn_w: constant index_map -> fetched to VMEM once and
    # reused across all T grid steps. hidden / output: blocked per timestep.
    enc_spec = pl.BlockSpec((L, B, H), lambda t: (0, 0, 0))
    hid_spec = pl.BlockSpec((None, B, H), lambda t: (t, 0, 0))
    out_spec = pl.BlockSpec((None, B, None, L), lambda t: (t, 0, 0, 0))
    out_shape = jax.ShapeDtypeStruct((T, B, 1, L), jnp.float32)
    cparams = pltpu.CompilerParams(dimension_semantics=("parallel",))

    if method == "general":
        wa_spec = pl.BlockSpec((H, H), lambda t: (0, 0))
        out = pl.pallas_call(
            _attn_kernel_general,
            grid=(T,),
            in_specs=[enc_spec, hid_spec, wa_spec],
            out_specs=out_spec,
            out_shape=out_shape,
            compiler_params=cparams,
        )(encoder_outputs, hid, params["attn_w"])
    elif method == "dot":
        # No unused weight operands DMA'd on this path.
        out = pl.pallas_call(
            _attn_kernel_dot,
            grid=(T,),
            in_specs=[enc_spec, hid_spec],
            out_specs=out_spec,
            out_shape=out_shape,
            compiler_params=cparams,
        )(encoder_outputs, hid)
    else:
        raise NotImplementedError(
            "method='concat' is broken in the original PyTorch code")

    return out[0] if single_step else out


def attn_reference(hidden, encoder_outputs, params=None, method="general"):
    """Pure-JAX reference of the PyTorch Attn.forward (bias included)."""
    if method == "general":
        trans = encoder_outputs @ params["attn_w"].T + params["attn_b"]
    else:
        trans = encoder_outputs
    energies = jnp.einsum("...bh,lbh->...bl", hidden, trans)
    aw = jax.nn.softmax(energies, axis=-1)
    return aw[..., None, :]


def init_params(key, hidden_size):
    """nn.Linear(hidden, hidden) default init: U(-1/sqrt(fan_in), +)."""
    k1, k2 = jax.random.split(key, 2)
    b = 1.0 / math.sqrt(hidden_size)
    return {
        "attn_w": jax.random.uniform(k1, (hidden_size, hidden_size),
                                     jnp.float32, -b, b),
        "attn_b": jax.random.uniform(k2, (hidden_size,), jnp.float32, -b, b),
    }


if __name__ == "__main__":
    T, B, L, H = 4, 2, 8, 32

    root = jax.random.PRNGKey(0)
    k_hid, k_enc, k_par = jax.random.split(root, 3)

    hidden_steps = jax.random.normal(k_hid, (T, B, H), jnp.float32)     # (T, B, H)
    encoder_outputs = jax.random.normal(k_enc, (L, B, H), jnp.float32)  # (L, B, H)
    params = init_params(k_par, H)

    for method in ("general", "dot"):
        # Batched-timesteps path: one pallas_call, grid over T.
        aw_T = jax.block_until_ready(
            attn_forward(hidden_steps, encoder_outputs, params, method=method))
        ref_T = attn_reference(hidden_steps, encoder_outputs, params, method=method)
        assert aw_T.shape == (T, B, 1, L)
        assert jnp.allclose(aw_T, ref_T, atol=1e-5, rtol=1e-5), method
        assert jnp.allclose(jnp.sum(aw_T, axis=-1), 1.0, atol=1e-5), method

        # Module-compatible single-step path.
        aw = jax.block_until_ready(
            attn_forward(hidden_steps[0], encoder_outputs, params, method=method))
        ref = attn_reference(hidden_steps[0], encoder_outputs, params, method=method)
        assert aw.shape == (B, 1, L)
        assert jnp.allclose(aw, ref, atol=1e-5, rtol=1e-5), method

    print("KERNEL_OK")
</pallas_src>

<mosaic_0001>
module attributes {stable_mosaic.version = 11 : i64} {
  func.func @_attn_kernel_general(%arg0: i32, %arg1: memref<8x2x32xf32, #tpu.memory_space<vmem>>, %arg2: memref<1x2x32xf32, #tpu.memory_space<vmem>>, %arg3: memref<32x32xf32, #tpu.memory_space<vmem>>, %arg4: memref<1x2x1x8xf32, #tpu.memory_space<vmem>>) attributes {dimension_semantics = [#tpu.dimension_semantics<parallel>], iteration_bounds = array<i64: 4>, scalar_prefetch = 0 : i64, scratch_operands = 0 : i64, tpu.core_type = #tpu.core_type<tc>, window_params = [{pipeline_mode = #tpu.pipeline_mode<synchronous>, transform_indices = @transform_0, window_bounds = array<i64: 8, 2, 32>}, {transform_indices = @transform_1, window_bounds = array<i64: 1, 2, 32>}, {pipeline_mode = #tpu.pipeline_mode<synchronous>, transform_indices = @transform_2, window_bounds = array<i64: 32, 32>}, {transform_indices = @transform_3, window_bounds = array<i64: 1, 2, 1, 8>}]} {
    %c0 = arith.constant 0 : index
    %c0_0 = arith.constant 0 : index
    %c0_1 = arith.constant 0 : index
    %0 = vector.load %arg1[%c0, %c0_0, %c0_1] : memref<8x2x32xf32, #tpu.memory_space<vmem>>, vector<8x2x32xf32>
    %c0_2 = arith.constant 0 : index
    %c0_3 = arith.constant 0 : index
    %c0_4 = arith.constant 0 : index
    %1 = vector.load %arg2[%c0_2, %c0_3, %c0_4] : memref<1x2x32xf32, #tpu.memory_space<vmem>>, vector<1x2x32xf32>
    %2 = vector.shape_cast %1 : vector<1x2x32xf32> to vector<2x32xf32>
    %c0_5 = arith.constant 0 : index
    %c0_6 = arith.constant 0 : index
    %3 = vector.load %arg3[%c0_5, %c0_6] : memref<32x32xf32, #tpu.memory_space<vmem>>, vector<32x32xf32>
    %cst = arith.constant dense<0.000000e+00> : vector<2x32xf32>
    %4 = tpu.matmul %2, %3, %cst {dimension_numbers = #tpu.dot_dimension_numbers<[1], [0], [0], [1], [0, 0, 1, 1], [], []>} : vector<2x32xf32>, vector<32x32xf32>, vector<2x32xf32> -> vector<2x32xf32>
    %5 = vector.shape_cast %4 : vector<2x32xf32> to vector<1x2x32xf32>
    %6 = vector.broadcast %5 : vector<1x2x32xf32> to vector<8x2x32xf32>
    %7 = arith.mulf %0, %6 : vector<8x2x32xf32>
    %cst_7 = arith.constant dense<0.000000e+00> : vector<8x2xf32>
    %8 = vector.multi_reduction <add>, %7, %cst_7 [2] : vector<8x2x32xf32> to vector<8x2xf32>
    %9 = tpu.transpose %8, [1, 0] : vector<8x2xf32> -> vector<2x8xf32>
    %cst_8 = arith.constant dense<0xFF800000> : vector<2xf32>
    %10 = vector.multi_reduction <maximumf>, %9, %cst_8 [1] : vector<2x8xf32> to vector<2xf32>
    %11 = vector.shape_cast %10 : vector<2xf32> to vector<2x1xf32>
    %12 = vector.broadcast %11 : vector<2x1xf32> to vector<2x8xf32>
    %13 = arith.subf %9, %12 : vector<2x8xf32>
    %14 = math.exp %13 : vector<2x8xf32>
    %cst_9 = arith.constant dense<0.000000e+00> : vector<2xf32>
    %15 = vector.multi_reduction <add>, %14, %cst_9 [1] : vector<2x8xf32> to vector<2xf32>
    %16 = vector.shape_cast %15 : vector<2xf32> to vector<2x1xf32>
    %17 = tpu.reciprocal %16 : vector<2x1xf32> -> vector<2x1xf32>
    %18 = vector.broadcast %17 : vector<2x1xf32> to vector<2x8xf32>
    %19 = arith.mulf %14, %18 : vector<2x8xf32>
    %c0_10 = arith.constant 0 : index
    %c0_11 = arith.constant 0 : index
    %c0_12 = arith.constant 0 : index
    %c0_13 = arith.constant 0 : index
    %20 = vector.load %arg4[%c0_10, %c0_11, %c0_12, %c0_13] : memref<1x2x1x8xf32, #tpu.memory_space<vmem>>, vector<1x2x1x8xf32>
    %21 = vector.shape_cast %20 : vector<1x2x1x8xf32> to vector<2x8xf32>
    %22 = vector.shape_cast %19 : vector<2x8xf32> to vector<1x2x1x8xf32>
    tpu.vector_store %arg4[%c0_10, %c0_11, %c0_12, %c0_13], %22 {strides = array<i32>} : memref<1x2x1x8xf32, #tpu.memory_space<vmem>>, vector<1x2x1x8xf32>,
    return
  }
  func.func @transform_0(%arg0: i32) -> (i32, i32, i32) {
    %c0_i32 = arith.constant 0 : i32
    %c0_i32_0 = arith.constant 0 : i32
    %c0_i32_1 = arith.constant 0 : i32
    %c0_i32_2 = arith.constant 0 : i32
    return %c0_i32, %c0_i32_0, %c0_i32_1 : i32, i32, i32
  }
  func.func @transform_1(%arg0: i32) -> (i32, i32, i32) {
    %c0_i32 = arith.constant 0 : i32
    %c0_i32_0 = arith.constant 0 : i32
    %c0_i32_1 = arith.constant 0 : i32
    return %arg0, %c0_i32, %c0_i32_0 : i32, i32, i32
  }
  func.func @transform_2(%arg0: i32) -> (i32, i32) {
    %c0_i32 = arith.constant 0 : i32
    %c0_i32_0 = arith.constant 0 : i32
    %c0_i32_1 = arith.constant 0 : i32
    return %c0_i32, %c0_i32_0 : i32, i32
  }
  func.func @transform_3(%arg0: i32) -> (i32, i32, i32, i32) {
    %c0_i32 = arith.constant 0 : i32
    %c0_i32_0 = arith.constant 0 : i32
    %c0_i32_1 = arith.constant 0 : i32
    %c0_i32_2 = arith.constant 0 : i32
    return %arg0, %c0_i32, %c0_i32_0, %c0_i32_1 : i32, i32, i32, i32
  }
}

</mosaic_0001>

<llo_original>
// kernel: tpu_custom_call.1
$region0: #{tpu_custom_call.1}
  #allocation0 [shape = 'u32[]', space=smem, size = 0x4, offset = 0x4, fixed_abs, tag = 'smem constant byte address 0x4 - core index']
  #allocation1 [shape = 'u32[144,128]{1,0:T(1,128)}', space=vmem, size = 0x12000, scoped, tag = 'internal scratch']
  %s0 = inlined_call_operand.hbm [shape: f32[8,2,32], index: 0, kind: input, shape index: {}]
  %s1 = inlined_call_operand.hbm [shape: f32[4,2,32], index: 1, kind: input, shape index: {}]
  %s2 = inlined_call_operand.hbm [shape: f32[32,32], index: 2, kind: input, shape index: {}]
  %s3 = inlined_call_operand.hbm [shape: f32[4,2,1,8], index: 3, kind: output, shape index: {}]
  %s4 = sld [smem:[#allocation0]]
  $region57: #{tpu_custom_call.1} parent=0
    _
  %s6 = ssub.s32 1, %s4
  %s7 = scalar_select 0, %s6, %s4
  $region1: #{tpu_custom_call.1} parent=0
    #allocation2 [shape = 'u8[8192]{0}', space=vmem, size = 0x2000, scoped, tag = 'input window, operand 0, single buffered']
    #allocation3 [shape = 's32[2]{0}', space=sflag, size = 0x8, scoped, tag = 'scoped memory for tpu_custom_call.1']
    #allocation4 [shape = 's32[2]{0}', space=sflag, size = 0x8, scoped, tag = 'scoped memory for tpu_custom_call.1']
    #allocation5 [shape = 'u8[2048]{0}', space=vmem, size = 0x800, scoped, tag = 'input window, operand 1']
    #allocation6 [shape = 's32[2]{0}', space=sflag, size = 0x8, scoped, tag = 'scoped memory for tpu_custom_call.1']
    #allocation7 [shape = 'u8[16384]{0}', space=vmem, size = 0x4000, scoped, tag = 'input window, operand 2, single buffered']
    #allocation8 [shape = 'u8[2048]{0}', space=vmem, size = 0x800, scoped, tag = 'output window, operand 0']
    %8 = vsyncpa [#allocation3], 0
    %9 = vsyncpa [#allocation6], 0
    %s10 = scalar_lea.sflag [#allocation6], 1
    %11 = vsyncpa %s10, 0
    %12 = vsyncpa [#allocation4], 0
    %s13 = scalar_lea.sflag [#allocation4], 1
    %14 = vsyncpa %s13, 0
    loop: start=0, step=1, limit=6
    $region2: #{tpu_custom_call.1} parent=1 // loop_pre_header
      _
    $region3: #{tpu_custom_call.1} parent=1 // loop_header
      %s16 = sphi 0, %s20
      %p17 = scmp.ge.s32.totalorder %s16, 6
      %s24 = sphi 0, %s24
      %s26 = sphi 0, %s24
      %s27 = sphi 0, %s26
      %s41 = sphi 0, %s27
      %s47 = sphi 0, %s49
      %s50 = sphi 0, %s47
      %s51 = sphi 0, %s50
      %s67 = sphi 0, %s51
      %s71 = sphi 0, %s71
      %s73 = sphi 0, %s71
      %s74 = sphi 0, %s73
      %s88 = sphi 0, %s74
      %s94 = sphi 0, %s96
      %s97 = sphi 0, %s94
      %s98 = sphi 0, %s97
      %s114 = sphi 0, %s98
    $region4: #{tpu_custom_call.1} parent=1 // loop_header_branch
      %19 = sbr.rel (%p17) target = $region8
    $region5: #{tpu_custom_call.1} parent=1 // loop_body
      %s21 = ssub.s32 %s16, 1
      %s22 = ssub.s32 %s16, 2
      %s23 = sadd.s32 %s16, 1
      %s25 = sadd.s32 %s24, 1
      %p28 = scmp.eq.s32.totalorder %s16, 3
      %p29 = scmp.ne.s32.totalorder %s24, %s26
      %p30 = scmp.eq.s32.totalorder %s16, 0
      %p31 = por %p29, %p30
      %p32 = scmp.ne.s32.totalorder %s24, %s26
      %p33 = scmp.eq.s32.totalorder %s21, 3
      %p34 = por %p32, %p33
      %p35 = scmp.ne.s32.totalorder %s26, %s27
      %p36 = scmp.eq.s32.totalorder %s21, 0
      %p37 = por %p35, %p36
      %p38 = scmp.ne.s32.totalorder %s26, %s27
      %p39 = scmp.eq.s32.totalorder %s22, 3
      %p40 = por %p38, %p39
      %p42 = scmp.ne.s32.totalorder %s27, %s41
      %p43 = scmp.eq.s32.totalorder %s22, 0
      %p44 = por %p42, %p43
      %s45 = ssub.s32 %s16, %s23
      %p46 = scmp.eq.s32.totalorder %s45, 0
      %s48 = sadd.s32 %s47, 1
      %s49 = scalar_select %p46, %s47, %s48
      %p52 = pneg %p46
      %p53 = scmp.eq.s32.totalorder %s16, 3
      %p54 = por %p52, %p53
      %p55 = scmp.ne.s32.totalorder %s47, %s50
      %p56 = scmp.eq.s32.totalorder %s16, 0
      %p57 = por %p55, %p56
      %p58 = scmp.ne.s32.totalorder %s47, %s50
      %p59 = scmp.eq.s32.totalorder %s21, 3
      %p60 = por %p58, %p59
      %p61 = scmp.ne.s32.totalorder %s50, %s51
      %p62 = scmp.eq.s32.totalorder %s21, 0
      %p63 = por %p61, %p62
      %p64 = scmp.ne.s32.totalorder %s50, %s51
      %p65 = scmp.eq.s32.totalorder %s22, 3
      %p66 = por %p64, %p65
      %p68 = scmp.ne.s32.totalorder %s51, %s67
      %p69 = scmp.eq.s32.totalorder %s22, 0
      %p70 = por %p68, %p69
      %s72 = sadd.s32 %s71, 1
      %p75 = scmp.eq.s32.totalorder %s16, 3
      %p76 = scmp.ne.s32.totalorder %s71, %s73
      %p77 = scmp.eq.s32.totalorder %s16, 0
      %p78 = por %p76, %p77
      %p79 = scmp.ne.s32.totalorder %s71, %s73
      %p80 = scmp.eq.s32.totalorder %s21, 3
      %p81 = por %p79, %p80
      %p82 = scmp.ne.s32.totalorder %s73, %s74
      %p83 = scmp.eq.s32.totalorder %s21, 0
      %p84 = por %p82, %p83
      %p85 = scmp.ne.s32.totalorder %s73, %s74
      %p86 = scmp.eq.s32.totalorder %s22, 3
      %p87 = por %p85, %p86
      %p89 = scmp.ne.s32.totalorder %s74, %s88
      %p90 = scmp.eq.s32.totalorder %s22, 0
      %p91 = por %p89, %p90
      %s92 = ssub.s32 %s16, %s23
      %p93 = scmp.eq.s32.totalorder %s92, 0
      %s95 = sadd.s32 %s94, 1
      %s96 = scalar_select %p93, %s94, %s95
      %p99 = pneg %p93
      %p100 = scmp.eq.s32.totalorder %s16, 3
      %p101 = por %p99, %p100
      %p102 = scmp.ne.s32.totalorder %s94, %s97
      %p103 = scmp.eq.s32.totalorder %s16, 0
      %p104 = por %p102, %p103
      %p105 = scmp.ne.s32.totalorder %s94, %s97
      %p106 = scmp.eq.s32.totalorder %s21, 3
      %p107 = por %p105, %p106
      %p108 = scmp.ne.s32.totalorder %s97, %s98
      %p109 = scmp.eq.s32.totalorder %s21, 0
      %p110 = por %p108, %p109
      %p111 = scmp.ne.s32.totalorder %s97, %s98
      %p112 = scmp.eq.s32.totalorder %s22, 3
      %p113 = por %p111, %p112
      %p115 = scmp.ne.s32.totalorder %s98, %s114
      %p116 = scmp.eq.s32.totalorder %s22, 0
      %p117 = por %p115, %p116
      %p118 = scmp.le.s32.totalorder 1, %s16
      %p119 = scmp.lt.s32.totalorder %s16, 5
      %p120 = pnand %p118, %p119
      %p121 = pneg %p120
      // Predicated region
      $region9: #{tpu_custom_call.1} parent=5 // pred_check
        _
      $region10: #{tpu_custom_call.1} parent=5 // pred_check_branch
        %123 = sbr.rel (%p120) target = $region12
      $region11: #{tpu_custom_call.1} parent=5 // pred_region
        %s124 = ssub.s32 %s16, 1
        // Predicated region
        $region13: #{tpu_custom_call.1} parent=11 // pred_check
          %p125 = pneg %p37
        $region14: #{tpu_custom_call.1} parent=11 // pred_check_branch
          %127 = sbr.rel (%p125) target = $region16
        $region15: #{tpu_custom_call.1} parent=11 // pred_region
          %s129 = ssub.s32 256, 256
          %130 = vsyncadd [#allocation3], %s129
          %s131 = sshll.u32 [#allocation2], 4
          %s132 = int_to_ptr.vmem [resolvable:$true] %s131
          %137 = dma.hbm_to_vmem [thread:$0]  %s0, 256, %s132, [#allocation3], 32, 32, 2
        $region16: #{tpu_custom_call.1} parent=11 // pred_fallthru
          _
        // Predicated region
        $region17: #{tpu_custom_call.1} parent=11 // pred_check
          %p138 = pneg %p84
        $region18: #{tpu_custom_call.1} parent=11 // pred_check_branch
          %140 = sbr.rel (%p138) target = $region20
        $region19: #{tpu_custom_call.1} parent=11 // pred_region
          %s142 = ssub.s32 512, 512
          %143 = vsyncadd [#allocation6], %s142
          %s144 = sshll.u32 [#allocation7], 4
          %s145 = int_to_ptr.vmem [resolvable:$true] %s144
          %150 = dma.hbm_to_vmem [thread:$0]  %s2, 512, %s145, [#allocation6], 128, 128, 8
        $region20: #{tpu_custom_call.1} parent=11 // pred_fallthru
          _
      $region12: #{tpu_custom_call.1} parent=5 // pred_fallthru
        _
      %p151 = scmp.lt.s32.totalorder %s16, 4
      // Predicated region
      $region21: #{tpu_custom_call.1} parent=5 // pred_check
        %p152 = pneg %p151
      $region22: #{tpu_custom_call.1} parent=5 // pred_check_branch
        %154 = sbr.rel (%p152) target = $region24
      $region23: #{tpu_custom_call.1} parent=5 // pred_region
        // Predicated region
        $region25: #{tpu_custom_call.1} parent=23 // pred_check
          %p155 = pneg %p57
        $region26: #{tpu_custom_call.1} parent=23 // pred_check_branch
          %157 = sbr.rel (%p155) target = $region28
        $region27: #{tpu_custom_call.1} parent=23 // pred_region
          %s158 = sand.u32 %s16, 1
          %s159 = scalar_lea.sflag [#allocation6], %s158
          %s160 = sand.u32 %s47, 1
          %s161 = smul.addr %s160, 2
          %s162 = scalar_lea.vmem [#allocation5], %s161
          %s164 = ssub.s32 32, 32
          %165 = vsyncadd %s159, %s164
          %s166 = smul.addr %s16, 32
          %s167 = scalar_lea.hbm %s1, %s166
          %s169 = sshll.u32 %s162, 4
          %s170 = int_to_ptr.vmem [resolvable:$true] %s169
          %172 = dma.hbm_to_vmem [thread:$0]  %s167, 32, %s170, %s159
        $region28: #{tpu_custom_call.1} parent=23 // pred_fallthru
          _
      $region24: #{tpu_custom_call.1} parent=5 // pred_fallthru
        _
      %p173 = scmp.le.s32.totalorder 1, %s16
      %p174 = scmp.lt.s32.totalorder %s16, 5
      %p175 = pnand %p173, %p174
      %p176 = pneg %p175
      // Predicated region
      $region29: #{tpu_custom_call.1} parent=5 // pred_check
        _
      $region30: #{tpu_custom_call.1} parent=5 // pred_check_branch
        %178 = sbr.rel (%p175) target = $region32
      $region31: #{tpu_custom_call.1} parent=5 // pred_region
        %s179 = ssub.s32 %s16, 1
        // Predicated region
        $region33: #{tpu_custom_call.1} parent=31 // pred_check
          %p180 = pneg %p37
        $region34: #{tpu_custom_call.1} parent=31 // pred_check_branch
          %182 = sbr.rel (%p180) target = $region36
        $region35: #{tpu_custom_call.1} parent=31 // pred_region
          %183 = dma.done [#allocation3], 256
        $region36: #{tpu_custom_call.1} parent=31 // pred_fallthru
          _
        %s184 = sand.u32 %s21, 1
        %s185 = scalar_lea.sflag [#allocation6], %s184
        %s186 = sand.u32 %s50, 1
        %s187 = smul.addr %s186, 2
        %s188 = scalar_lea.vmem [#allocation5], %s187
        // Predicated region
        $region37: #{tpu_custom_call.1} parent=31 // pred_check
          %p189 = pneg %p63
        $region38: #{tpu_custom_call.1} parent=31 // pred_check_branch
          %191 = sbr.rel (%p189) target = $region40
        $region39: #{tpu_custom_call.1} parent=31 // pred_region
          %192 = dma.done %s185, 32
        $region40: #{tpu_custom_call.1} parent=31 // pred_fallthru
          _
        // Predicated region
        $region41: #{tpu_custom_call.1} parent=31 // pred_check
          %p193 = pneg %p84
        $region42: #{tpu_custom_call.1} parent=31 // pred_check_branch
          %195 = sbr.rel (%p193) target = $region44
        $region43: #{tpu_custom_call.1} parent=31 // pred_region
          %196 = dma.done [#allocation6], 512
        $region44: #{tpu_custom_call.1} parent=31 // pred_fallthru
          _
        %p197 = pneg %p37
        %p198 = pneg %p34
        %s199 = sand.u32 %s21, 1
        %s200 = scalar_lea.sflag [#allocation6], %s199
        %s201 = sand.u32 %s50, 1
        %s202 = smul.addr %s201, 2
        %s203 = scalar_lea.vmem [#allocation5], %s202
        %p204 = pneg %p63
        %p205 = pneg %p60
        %p206 = pneg %p84
        %p207 = pneg %p81
        %p208 = pneg %p110
        %p209 = pneg %p107
        %s210 = sand.u32 %s97, 1
        %s211 = scalar_lea.sflag [#allocation4], %s210
        %s212 = sand.u32 %s97, 1
        %s213 = smul.addr %s212, 2
        %s214 = scalar_lea.vmem [#allocation8], %s213
        %v215 = vld [vmem:[#allocation2] sm:$0x3]
        %v216 = vld [vmem:[#allocation2 + $0x2] sm:$0x3]
        %v217 = vld [vmem:[#allocation2 + $0x4] sm:$0x3]
        %v218 = vld [vmem:[#allocation2 + $0x6] sm:$0x3]
        %v219 = vld [vmem:[#allocation2 + $0x8] sm:$0x3]
        %v220 = vld [vmem:[#allocation2 + $0xa] sm:$0x3]
        %v221 = vld [vmem:[#allocation2 + $0xc] sm:$0x3]
        %v222 = vld [vmem:[#allocation2 + $0xe] sm:$0x3]
        %v223 = vld [vmem:[%s188] sm:$0x3]
        %v224 = vld [vmem:[#allocation7] sm:$0xff]
        %v225 = vld [vmem:[#allocation7 + $0x8] sm:$0xff]
        %v226 = vld [vmem:[#allocation7 + $0x10] sm:$0xff]
        %v227 = vld [vmem:[#allocation7 + $0x18] sm:$0xff]
        %vm228 = vcmask 261120
        %v230 = vsel %vm228, %v223, 0
        %232 = vmatprep.subr.mxu0 0.0
        %233 = vmatpush1.msra.mxu0 0.0
        %234 = vmatprep.subr.mxu0 0.0
        %235 = vmatpush1.msra.mxu0 0.0
        %236 = vmatprep.subr.mxu0 0.0
        %237 = vmatpush1.msra.mxu0 0.0
        %238 = vmatprep.subr.mxu0 0.0
        %239 = vmatpush1.msra.mxu0 0.0
        %240 = vmatprep.subr.mxu0 0.0
        %241 = vmatpush1.msra.mxu0 0.0
        %242 = vmatprep.subr.mxu0 0.0
        %243 = vmatpush1.msra.mxu0 0.0
        %244 = vmatprep.subr.mxu0 0.0
        %245 = vmatpush1.msra.mxu0 0.0
        %246 = vmatprep.subr.mxu0 0.0
        %247 = vmatpush1.msra.mxu0 0.0
        %248 = vmatprep.subr.mxu0 0.0
        %249 = vmatpush1.msra.mxu0 0.0
        %250 = vmatprep.subr.mxu0 0.0
        %251 = vmatpush1.msra.mxu0 0.0
        %252 = vmatprep.subr.mxu0 0.0
        %253 = vmatpush1.msra.mxu0 0.0
        %254 = vmatprep.subr.mxu0 0.0
        %255 = vmatpush1.msra.mxu0 0.0
        %256 = vmatprep.subr.mxu0 0.0
        %257 = vmatpush1.msra.mxu0 %v227
        %258 = vmatprep.subr.mxu0 0.0
        %259 = vmatpush1.msra.mxu0 %v226
        %260 = vmatprep.subr.mxu0 0.0
        %261 = vmatpush1.msra.mxu0 %v225
        %262 = vmatprep.subr.mxu0 0.0
        %263 = vmatpush1.msra.mxu0 %v224
        %264 = vmatprep.subr.mxu0 0.0
        %265 = vmatpush2.msra.mxu0 0.0
        %266 = vmatprep.subr.mxu0 0.0
        %267 = vmatpush2.msra.mxu0 0.0
        %268 = vmatprep.subr.mxu0 0.0
        %269 = vmatpush2.msra.mxu0 0.0
        %270 = vmatprep.subr.mxu0 0.0
        %271 = vmatpush2.msra.mxu0 0.0
        %272 = vmatprep.subr.mxu0 0.0
        %273 = vmatpush2.msra.mxu0 0.0
        %274 = vmatprep.subr.mxu0 0.0
        %275 = vmatpush2.msra.mxu0 0.0
        %276 = vmatprep.subr.mxu0 0.0
        %277 = vmatpush2.msra.mxu0 0.0
        %278 = vmatprep.subr.mxu0 0.0
        %279 = vmatpush2.msra.mxu0 0.0
        %280 = vmatprep.subr.mxu0 0.0
        %281 = vmatpush2.msra.mxu0 0.0
        %282 = vmatprep.subr.mxu0 0.0
        %283 = vmatpush2.msra.mxu0 0.0
        %284 = vmatprep.subr.mxu0 0.0
        %285 = vmatpush2.msra.mxu0 0.0
        %286 = vmatprep.subr.mxu0 0.0
        %287 = vmatpush2.msra.mxu0 0.0
        %288 = vmatprep.subr.mxu0 0.0
        %289 = vmatpush2.msra.mxu0 0.0
        %290 = vmatprep.subr.mxu0 0.0
        %291 = vmatpush2.msra.mxu0 0.0
        %292 = vmatprep.subr.mxu0 0.0
        %293 = vmatpush2.msra.mxu0 0.0
        %294 = vmatprep.subr.mxu0 0.0
        %295 = vmatpush2.msra.mxu0 0.0
        %296 = vmatprep.mubr.f32.mxu0 0.0
        %297 = vmatmul.mubr.f32.gmra.mxu0 %v230
        %v298 = vpop.f32.mrf.mxu0
        %v299 = vadd.f32 0.0, %v298
        %v300 = vpop.f32.mrf.mxu0
        %301 = vdwg.mxu0
        %v302 = vmul.f32 %v215, %v299
        %v303 = vmul.f32 %v216, %v299
        %v304 = vmul.f32 %v217, %v299
        %v305 = vmul.f32 %v218, %v299
        %v306 = vmul.f32 %v219, %v299
        %v307 = vmul.f32 %v220, %v299
        %v308 = vmul.f32 %v221, %v299
        %v309 = vmul.f32 %v222, %v299
        %vm310 = vcmask 254976
        %v311 = vsel %vm310, %v302, 0.0
        %312 = vadd.xlane.f32.xlu0 %v311
        %v313 = vpop.xlane.xlu0 %312
        %v314 = vsel %vm310, %v303, 0.0
        %315 = vadd.xlane.f32.xlu0 %v314
        %v316 = vpop.xlane.xlu0 %315
        %v317 = vsel %vm310, %v304, 0.0
        %318 = vadd.xlane.f32.xlu0 %v317
        %v319 = vpop.xlane.xlu0 %318
        %v320 = vsel %vm310, %v305, 0.0
        %321 = vadd.xlane.f32.xlu0 %v320
        %v322 = vpop.xlane.xlu0 %321
        %v323 = vsel %vm310, %v306, 0.0
        %324 = vadd.xlane.f32.xlu0 %v323
        %v325 = vpop.xlane.xlu0 %324
        %v326 = vsel %vm310, %v307, 0.0
        %327 = vadd.xlane.f32.xlu0 %v326
        %v328 = vpop.xlane.xlu0 %327
        %v329 = vsel %vm310, %v308, 0.0
        %330 = vadd.xlane.f32.xlu0 %v329
        %v331 = vpop.xlane.xlu0 %330
        %v332 = vsel %vm310, %v309, 0.0
        %333 = vadd.xlane.f32.xlu0 %v332
        %v334 = vpop.xlane.xlu0 %333
        %v343 = vlaneseq
        %v344 = vand.u32 %v343, 127
        %v345 = vlaneseq
        %v346 = vshrl.u32 %v345, 7
        %v347 = vsub.s32 %v344, %v346
        %v348 = vrot.slane %v313, %v347
        %v349 = vlaneseq
        %v350 = vshrl.u32 %v349, 7
        %v351 = vsub.s32 %v344, %v350
        %v352 = vrot.slane %v316, %v351
        %v353 = vlaneseq
        %v354 = vshrl.u32 %v353, 7
        %v355 = vsub.s32 %v344, %v354
        %v356 = vrot.slane %v319, %v355
        %v357 = vlaneseq
        %v358 = vshrl.u32 %v357, 7
        %v359 = vsub.s32 %v344, %v358
        %v360 = vrot.slane %v322, %v359
        %v361 = vlaneseq
        %v362 = vshrl.u32 %v361, 7
        %v363 = vsub.s32 %v344, %v362
        %v364 = vrot.slane %v325, %v363
        %v365 = vlaneseq
        %v366 = vshrl.u32 %v365, 7
        %v367 = vsub.s32 %v344, %v366
        %v368 = vrot.slane %v328, %v367
        %v369 = vlaneseq
        %v370 = vshrl.u32 %v369, 7
        %v371 = vsub.s32 %v344, %v370
        %v372 = vrot.slane %v331, %v371
        %v373 = vlaneseq
        %v374 = vshrl.u32 %v373, 7
        %v375 = vsub.s32 %v344, %v374
        %v376 = vrot.slane %v334, %v375
        %vm377 = vcmask 1041409
        %v378 = vsel %vm377, %v352, %v348
        %vm379 = vcmask 1042434
        %v380 = vsel %vm379, %v356, %v378
        %vm381 = vcmask 1043459
        %v382 = vsel %vm381, %v360, %v380
        %vm383 = vcmask 1044484
        %v384 = vsel %vm383, %v364, %v382
        %vm385 = vcmask 1045509
        %v386 = vsel %vm385, %v368, %v384
        %vm387 = vcmask 1046534
        %v388 = vsel %vm387, %v372, %v386
        %vm389 = vcmask 1047559
        %v390 = vsel %vm389, %v376, %v388
        %392 = vxpose.xlu0.b32.start [1/16] %v390, 128
        %393 = vxpose.xlu0.b32.cont [2/16] 0.0, 128
        %394 = vxpose.xlu0.b32.cont [3/16] 0.0, 128
        %395 = vxpose.xlu0.b32.cont [4/16] 0.0, 128
        %396 = vxpose.xlu0.b32.cont [5/16] 0.0, 128
        %397 = vxpose.xlu0.b32.cont [6/16] 0.0, 128
        %398 = vxpose.xlu0.b32.cont [7/16] 0.0, 128
        %399 = vxpose.xlu0.b32.cont [8/16] 0.0, 128
        %400 = vxpose.xlu0.b32.cont [9/16] 0.0, 128
        %401 = vxpose.xlu0.b32.cont [10/16] 0.0, 128
        %402 = vxpose.xlu0.b32.cont [11/16] 0.0, 128
        %403 = vxpose.xlu0.b32.cont [12/16] 0.0, 128
        %404 = vxpose.xlu0.b32.cont [13/16] 0.0, 128
        %405 = vxpose.xlu0.b32.cont [14/16] 0.0, 128
        %406 = vxpose.xlu0.b32.cont [15/16] 0.0, 128
        %407 = vxpose.xlu0.b32.end [16/16] 0.0, 128
        %v408 = vpop.trf.xlu0
        %v409 = vpop.trf.xlu0
        %v410 = vpop.trf.xlu0
        %v411 = vpop.trf.xlu0
        %v412 = vpop.trf.xlu0
        %v413 = vpop.trf.xlu0
        %v414 = vpop.trf.xlu0
        %v415 = vpop.trf.xlu0
        %v416 = vpop.trf.xlu0
        %v417 = vpop.trf.xlu0
        %v418 = vpop.trf.xlu0
        %v419 = vpop.trf.xlu0
        %v420 = vpop.trf.xlu0
        %v421 = vpop.trf.xlu0
        %v422 = vpop.trf.xlu0
        %v423 = vpop.trf.xlu0
        %vm424 = vcmask 58368
        %v425 = vsel %vm424, %v408, -inf
        %426 = vmax.xlane.f32.xlu0 %v425
        %v427 = vpop.xlane.xlu0 %426
        %v428 = vsub.f32 %v408, %v427
        %v429 = vmul.f32 %v428, 1.442695
        %v430 = vpow.pop %v429
        %v431 = vsel %vm424, %v430, 0.0
        %432 = vadd.xlane.f32.xlu0 %v431
        %v433 = vpop.xlane.xlu0 %432
        %v434 = vrcp.pop %v433
        %v435 = vmul.f32 %v430, %v434
        %v438 = vunpack.c.l.s4 1966171168
        %v439 = vunpack.c.0.s8 %v438
        %v440 = vlaneseq
        %v441 = vshrl.u32 %v440, 7
        %v442 = vsub.s32 %v439, %v441
        %v443 = vrot.slane %v435, %v442
        %v444 = vcombine.high %v443, %v443
        %v446 = vunpack.c.l.s4 1966171168
        %v447 = vunpack.c.0.s8 %v446
        %v448 = vlaneseq
        %v449 = vshrl.u32 %v448, 7
        %v450 = vsub.s32 %v447, %v449
        %v451 = vrot.slane %v443, %v450
        %v453 = vunpack.c.l.s4 1966171168
        %v454 = vunpack.c.0.s8 %v453
        %v455 = vlaneseq
        %v456 = vshrl.u32 %v455, 7
        %v457 = vsub.s32 %v454, %v456
        %v458 = vrot.slane %v444, %v457
        %vm461 = vcmask 57344
        %462 = vst.msk [vmem:[%s214] sm:$0x1] %vm461, %v451
        %463 = vst.msk [vmem:[%s214 + $0x1] sm:$0x1] %vm461, %v458
        %s464 = sand.u32 %s97, 1
        %s465 = scalar_lea.sflag [#allocation4], %s464
        %s466 = sand.u32 %s97, 1
        %s467 = smul.addr %s466, 2
        %s468 = scalar_lea.vmem [#allocation8], %s467
        // Predicated region
        $region45: #{tpu_custom_call.1} parent=31 // pred_check
          %p469 = pneg %p107
        $region46: #{tpu_custom_call.1} parent=31 // pred_check_branch
          %471 = sbr.rel (%p469) target = $region48
        $region47: #{tpu_custom_call.1} parent=31 // pred_region
          %s473 = ssub.s32 32, 32
          %474 = vsyncadd %s465, %s473
          %s475 = smul.addr %s21, 2
          %s476 = smul.addr %s475, 16
          %s477 = scalar_lea.hbm %s3, %s476
          %s478 = sshll.u32 %s468, 4
          %s479 = int_to_ptr.vmem [resolvable:$true] %s478
          %484 = dma.vmem_to_hbm [thread:$0]  %s479, 32, %s477, %s465, 16, 16, 1
        $region48: #{tpu_custom_call.1} parent=31 // pred_fallthru
          _
      $region32: #{tpu_custom_call.1} parent=5 // pred_fallthru
        _
      %p485 = scmp.le.s32.totalorder 2, %s16
      // Predicated region
      $region49: #{tpu_custom_call.1} parent=5 // pred_check
        %p486 = pneg %p485
      $region50: #{tpu_custom_call.1} parent=5 // pred_check_branch
        %488 = sbr.rel (%p486) target = $region52
      $region51: #{tpu_custom_call.1} parent=5 // pred_region
        %s489 = ssub.s32 %s16, 2
        // Predicated region
        $region53: #{tpu_custom_call.1} parent=51 // pred_check
          %p490 = pneg %p113
        $region54: #{tpu_custom_call.1} parent=51 // pred_check_branch
          %492 = sbr.rel (%p490) target = $region56
        $region55: #{tpu_custom_call.1} parent=51 // pred_region
          %s493 = sand.u32 %s98, 1
          %s494 = scalar_lea.sflag [#allocation4], %s493
          %s495 = sand.u32 %s98, 1
          %s496 = smul.addr %s495, 2
          %s497 = scalar_lea.vmem [#allocation8], %s496
          %498 = dma.done %s494, 32
        $region56: #{tpu_custom_call.1} parent=51 // pred_fallthru
          _
      $region52: #{tpu_custom_call.1} parent=5 // pred_fallthru
        _
    $region6: #{tpu_custom_call.1} parent=1 // loop_footer
      %s20 = sadd.s32 1, %s16
    $region7: #{tpu_custom_call.1} parent=1 // loop_footer_branch
      %15 = sbr.rel target = $region3
    $region8: #{tpu_custom_call.1} parent=1 // loop_exit
      _
    %499 = vsyncpa [#allocation3], 1
    %s500 = scalar_lea.sflag [#allocation3], 1
    %501 = vsyncpa %s500, 1
    %502 = vsyncpa [#allocation6], 1
    %s503 = scalar_lea.sflag [#allocation6], 1
    %504 = vsyncpa %s503, 1
    %505 = vsyncpa [#allocation4], 1
    %s506 = scalar_lea.sflag [#allocation4], 1
    %507 = vsyncpa %s506, 1

</llo_original>
